<compile_context>
chip_gen: v7x
topology: tpu7x:2x2x1
jax: 0.10.0
libtpu: 0.0.40
codegen_flags: <defaults>
</compile_context>

<pallas_src>
import math
import functools

import jax
import jax.numpy as jnp
from jax.experimental import pallas as pl
from jax.experimental.pallas import tpu as pltpu


def _margin_kernel(labels_ref, logits_ref, out_ref, *,
                   s, m1, m3, cos_m, sin_m, theta, sinmm, easy_margin, tc):
    j = pl.program_id(1)                       # class-tile index (inner grid axis)

    x = logits_ref[...]                        # (tn, tc), logits dtype
    xf = x.astype(jnp.float32)                 # margin math in f32 (bf16-safe)

    lab = labels_ref[...]                      # (tn, 1) int32
    rel = lab - j * tc                         # label column relative to this tile
    cols = jax.lax.broadcasted_iota(jnp.int32, x.shape, dimension=1)
    is_target = (cols == rel) & (lab != -1)    # (tn,1) broadcast -> (tn,tc)

    if m1 == 1.0 and m3 == 0.0:
        # ArcFace-style additive angular margin. Clamp the sqrt argument so that
        # |x| > 1 (fp rounding / unnormalized logits) cannot produce NaNs.
        sin_theta = jnp.sqrt(jnp.maximum(1.0 - xf * xf, 0.0))
        cos_theta_m = xf * cos_m - sin_theta * sin_m
        if easy_margin:
            final = jnp.where(xf > 0.0, cos_theta_m, xf)
        else:
            final = jnp.where(xf > theta, cos_theta_m, xf - sinmm)
    elif m3 > 0.0:
        # CosFace-style additive cosine margin.
        final = xf - m3
    else:
        raise ValueError("unsupported margin configuration (need m1==1,m3==0 or m3>0)")

    out_ref[...] = (jnp.where(is_target, final, xf) * s).astype(out_ref.dtype)


def combined_margin_loss(logits, labels, *, s, m1, m2, m3,
                         interclass_filtering_threshold=0, easy_margin=False,
                         row_tile=512, class_tile=1024):
    # TODO(synk): interclass_filtering_threshold > 0 (scatter-based dirty-logit
    # filtering) and m1 != 1 (SphereFace multiplicative margin) are not implemented;
    # the default PyTorch path (threshold 0, ArcFace / CosFace) is reproduced exactly.
    assert interclass_filtering_threshold == 0

    N, C = logits.shape
    tn = min(row_tile, N)
    tc = min(class_tile, C)
    assert N % tn == 0 and C % tc == 0, "N/C must be divisible by the chosen tiles"

    cos_m = math.cos(m2)
    sin_m = math.sin(m2)
    theta = math.cos(math.pi - m2)
    sinmm = math.sin(math.pi - m2) * m2

    labels2d = labels.astype(jnp.int32).reshape(N, 1)

    kernel = functools.partial(
        _margin_kernel,
        s=s, m1=m1, m3=m3,
        cos_m=cos_m, sin_m=sin_m, theta=theta, sinmm=sinmm,
        easy_margin=easy_margin, tc=tc,
    )

    # Live VMEM: double-buffered logits in + out tiles plus lane-padded labels.
    itemsize = jnp.dtype(logits.dtype).itemsize
    live_bytes = 4 * tn * tc * itemsize + 2 * tn * 128 * 4
    vmem_limit = int(min(max(live_bytes * 3 // 2, 16 * 1024 * 1024),
                         48 * 1024 * 1024))

    return pl.pallas_call(
        kernel,
        out_shape=jax.ShapeDtypeStruct((N, C), logits.dtype),
        grid_spec=pltpu.PrefetchScalarGridSpec(
            num_scalar_prefetch=0,
            grid=(N // tn, C // tc),                            # rows outer, classes inner
            in_specs=[
                pl.BlockSpec((tn, 1), lambda i, j: (i, 0)),     # labels: DMA only when i changes
                pl.BlockSpec((tn, tc), lambda i, j: (i, j)),    # logits row/class tile
            ],
            out_specs=pl.BlockSpec((tn, tc), lambda i, j: (i, j)),
        ),
        compiler_params=pltpu.CompilerParams(
            dimension_semantics=("parallel", "parallel"),
            vmem_limit_bytes=vmem_limit,
        ),
        input_output_aliases={1: 0},                            # logits buffer reused as output
    )(labels2d, logits)


def _reference(logits, labels, *, s, m1, m2, m3, easy_margin=False):
    # Pure-JAX reference mirroring the PyTorch forward (math in f32, output in input dtype).
    cos_m = math.cos(m2)
    sin_m = math.sin(m2)
    theta = math.cos(math.pi - m2)
    sinmm = math.sin(math.pi - m2) * m2
    x = logits.astype(jnp.float32)
    N, C = x.shape
    cols = jnp.arange(C)[None, :]
    lab = labels[:, None]
    is_target = (cols == lab) & (lab != -1)
    if m1 == 1.0 and m3 == 0.0:
        sin_theta = jnp.sqrt(jnp.maximum(1.0 - x * x, 0.0))
        cos_theta_m = x * cos_m - sin_theta * sin_m
        if easy_margin:
            final = jnp.where(x > 0.0, cos_theta_m, x)
        else:
            final = jnp.where(x > theta, cos_theta_m, x - sinmm)
    else:
        final = x - m3
    return (jnp.where(is_target, final, x) * s).astype(logits.dtype)


if __name__ == "__main__":
    key = jax.random.PRNGKey(0)
    k1, k2, k3, k4 = jax.random.split(key, 4)

    # --- f32 tests, small (8,128)-aligned shapes ------------------------------
    N, C = 8, 256
    logits = jnp.tanh(jax.random.normal(k1, (N, C), dtype=jnp.float32))  # cos sims in (-1,1)
    labels = jax.random.randint(k2, (N,), 0, C, dtype=jnp.int32)
    labels = labels.at[3].set(-1)               # one row with no positive class

    # ArcFace config: s=64, m1=1.0, m2=0.5, m3=0.0
    out = combined_margin_loss(logits, labels, s=64.0, m1=1.0, m2=0.5, m3=0.0)
    out = jax.block_until_ready(out)
    ref = _reference(logits, labels, s=64.0, m1=1.0, m2=0.5, m3=0.0)
    assert jnp.allclose(out, ref, atol=1e-5, rtol=1e-5)

    # CosFace config: s=64, m1=1.0, m2=0.0, m3=0.4
    out2 = combined_margin_loss(logits, labels, s=64.0, m1=1.0, m2=0.0, m3=0.4)
    out2 = jax.block_until_ready(out2)
    ref2 = _reference(logits, labels, s=64.0, m1=1.0, m2=0.0, m3=0.4)
    assert jnp.allclose(out2, ref2, atol=1e-5, rtol=1e-5)

    # --- bf16 I/O test (f32 math inside the kernel) ---------------------------
    Nb, Cb = 16, 256
    logits_bf = jnp.tanh(jax.random.normal(k3, (Nb, Cb), dtype=jnp.float32)).astype(jnp.bfloat16)
    labels_b = jax.random.randint(k4, (Nb,), 0, Cb, dtype=jnp.int32)
    labels_b = labels_b.at[0].set(-1)

    out3 = combined_margin_loss(logits_bf, labels_b, s=64.0, m1=1.0, m2=0.5, m3=0.0)
    out3 = jax.block_until_ready(out3)
    ref3 = _reference(logits_bf, labels_b, s=64.0, m1=1.0, m2=0.5, m3=0.0)
    assert jnp.allclose(out3.astype(jnp.float32), ref3.astype(jnp.float32),
                        atol=0.5, rtol=2e-2)

    print("KERNEL_OK")
</pallas_src>

<mosaic_0001>
module attributes {stable_mosaic.version = 11 : i64} {
  func.func @_margin_kernel(%arg0: i32, %arg1: i32, %arg2: memref<8x1xi32, #tpu.memory_space<vmem>>, %arg3: memref<8x256xf32, #tpu.memory_space<vmem>>, %arg4: memref<8x256xf32, #tpu.memory_space<vmem>>) attributes {dimension_semantics = [#tpu.dimension_semantics<parallel>, #tpu.dimension_semantics<parallel>], iteration_bounds = array<i64: 1, 1>, scalar_prefetch = 0 : i64, scratch_operands = 0 : i64, tpu.core_type = #tpu.core_type<tc>, window_params = [{transform_indices = @transform_0, window_bounds = array<i64: 8, 1>}, {transform_indices = @transform_1, window_bounds = array<i64: 8, 256>}, {transform_indices = @transform_2, window_bounds = array<i64: 8, 256>}]} {
    %c0 = arith.constant 0 : index
    %c0_0 = arith.constant 0 : index
    %0 = vector.load %arg3[%c0, %c0_0] : memref<8x256xf32, #tpu.memory_space<vmem>>, vector<8x256xf32>
    %c0_1 = arith.constant 0 : index
    %c0_2 = arith.constant 0 : index
    %1 = vector.load %arg2[%c0_1, %c0_2] : memref<8x1xi32, #tpu.memory_space<vmem>>, vector<8x1xi32>
    %c256_i32 = arith.constant 256 : i32
    %2 = arith.muli %arg1, %c256_i32 : i32
    %3 = vector.broadcast %2 : i32 to vector<8x1xi32>
    %4 = arith.subi %1, %3 : vector<8x1xi32>
    %5 = tpu.iota {dimensions = array<i32: 1>} : vector<8x256xi32>
    %6 = vector.broadcast %4 : vector<8x1xi32> to vector<8x256xi32>
    %7 = arith.cmpi eq, %5, %6 : vector<8x256xi32>
    %c-1_i32 = arith.constant -1 : i32
    %8 = vector.broadcast %c-1_i32 : i32 to vector<8x1xi32>
    %9 = arith.cmpi ne, %1, %8 : vector<8x1xi32>
    %10 = vector.broadcast %9 : vector<8x1xi1> to vector<8x256xi1>
    %11 = arith.andi %7, %10 : vector<8x256xi1>
    %12 = arith.mulf %0, %0 : vector<8x256xf32>
    %cst = arith.constant 1.000000e+00 : f32
    %13 = vector.broadcast %cst : f32 to vector<8x256xf32>
    %14 = arith.subf %13, %12 : vector<8x256xf32>
    %cst_3 = arith.constant 0.000000e+00 : f32
    %15 = vector.broadcast %cst_3 : f32 to vector<8x256xf32>
    %16 = arith.maximumf %14, %15 : vector<8x256xf32>
    %17 = math.sqrt %16 : vector<8x256xf32>
    %cst_4 = arith.constant 0.87758255 : f32
    %18 = vector.broadcast %cst_4 : f32 to vector<8x256xf32>
    %19 = arith.mulf %0, %18 : vector<8x256xf32>
    %cst_5 = arith.constant 0.47942555 : f32
    %20 = vector.broadcast %cst_5 : f32 to vector<8x256xf32>
    %21 = arith.mulf %17, %20 : vector<8x256xf32>
    %22 = arith.subf %19, %21 : vector<8x256xf32>
    %cst_6 = arith.constant -0.87758255 : f32
    %23 = vector.broadcast %cst_6 : f32 to vector<8x256xf32>
    %24 = arith.cmpf ogt, %0, %23 : vector<8x256xf32>
    %cst_7 = arith.constant 0.239712775 : f32
    %25 = vector.broadcast %cst_7 : f32 to vector<8x256xf32>
    %26 = arith.subf %0, %25 : vector<8x256xf32>
    %27 = arith.select %24, %22, %26 : vector<8x256xi1>, vector<8x256xf32>
    %28 = arith.select %11, %27, %0 : vector<8x256xi1>, vector<8x256xf32>
    %cst_8 = arith.constant 6.400000e+01 : f32
    %29 = vector.broadcast %cst_8 : f32 to vector<8x256xf32>
    %30 = arith.mulf %28, %29 : vector<8x256xf32>
    %c0_9 = arith.constant 0 : index
    %c0_10 = arith.constant 0 : index
    %31 = vector.load %arg4[%c0_9, %c0_10] : memref<8x256xf32, #tpu.memory_space<vmem>>, vector<8x256xf32>
    tpu.vector_store %arg4[%c0_9, %c0_10], %30 {strides = array<i32>} : memref<8x256xf32, #tpu.memory_space<vmem>>, vector<8x256xf32>,
    return
  }
  func.func @transform_0(%arg0: i32, %arg1: i32) -> (i32, i32) {
    %c0_i32 = arith.constant 0 : i32
    %c0_i32_0 = arith.constant 0 : i32
    return %arg0, %c0_i32 : i32, i32
  }
  func.func @transform_1(%arg0: i32, %arg1: i32) -> (i32, i32) {
    %c0_i32 = arith.constant 0 : i32
    return %arg0, %arg1 : i32, i32
  }
  func.func @transform_2(%arg0: i32, %arg1: i32) -> (i32, i32) {
    %c0_i32 = arith.constant 0 : i32
    return %arg0, %arg1 : i32, i32
  }
}

</mosaic_0001>

<llo_original>
// kernel: tpu_custom_call.1
$region0: #{tpu_custom_call.1}
  #allocation0 [shape = 'u32[]', space=smem, size = 0x4, offset = 0x4, fixed_abs, tag = 'smem constant byte address 0x4 - core index']
  #allocation1 [shape = 'u32[144,128]{1,0:T(1,128)}', space=vmem, size = 0x12000, scoped, tag = 'internal scratch']
  %s0 = inlined_call_operand.vmem [shape: s32[8,1], index: 0, kind: input, shape index: {}]
  %s1 = inlined_call_operand.hbm [shape: f32[8,256], index: 1, kind: input, shape index: {}, may-alias: {1,2}]
  %s2 = inlined_call_operand.hbm [shape: f32[8,256], index: 2, kind: output, shape index: {}, may-alias: {1,2}]
  %s3 = sld [smem:[#allocation0]]
  $region22: #{tpu_custom_call.1} parent=0
    _
  %s5 = ssub.s32 1, %s3
  %s6 = scalar_select 0, %s5, %s3
  $region1: #{tpu_custom_call.1} parent=0
    #allocation2 [shape = 'u8[8192]{0}', space=vmem, size = 0x2000, scoped, tag = 'input window, operand 1, single buffered']
    #allocation3 [shape = 's32[1]{0}', space=sflag, size = 0x4, scoped, tag = 'scoped memory for tpu_custom_call.1']
    #allocation4 [shape = 's32[1]{0}', space=sflag, size = 0x4, scoped, tag = 'scoped memory for tpu_custom_call.1']
    #allocation5 [shape = 'u8[8192]{0}', space=vmem, size = 0x2000, scoped, tag = 'output window, operand 0, single buffered']
    %7 = vsyncpa [#allocation3], 0
    %8 = vsyncpa [#allocation4], 0
    // Predicated region
    $region2: #{tpu_custom_call.1} parent=1 // pred_check
      _
    $region3: #{tpu_custom_call.1} parent=1 // pred_check_branch
      %10 = sbr.rel (0) target = $region5
    $region4: #{tpu_custom_call.1} parent=1 // pred_region
      _
    $region5: #{tpu_custom_call.1} parent=1 // pred_fallthru
      _
    // Predicated region
    $region6: #{tpu_custom_call.1} parent=1 // pred_check
      _
    $region7: #{tpu_custom_call.1} parent=1 // pred_check_branch
      %12 = sbr.rel (0) target = $region9
    $region8: #{tpu_custom_call.1} parent=1 // pred_region
      %s14 = ssub.s32 256, 256
      %15 = vsyncadd [#allocation3], %s14
      %s17 = sshll.u32 [#allocation2], 4
      %s18 = int_to_ptr.vmem [resolvable:$true] %s17
      %20 = dma.hbm_to_vmem [thread:$0]  %s1, 256, %s18, [#allocation3]
    $region9: #{tpu_custom_call.1} parent=1 // pred_fallthru
      _
    // Predicated region
    $region10: #{tpu_custom_call.1} parent=1 // pred_check
      _
    $region11: #{tpu_custom_call.1} parent=1 // pred_check_branch
      %22 = sbr.rel (0) target = $region13
    $region12: #{tpu_custom_call.1} parent=1 // pred_region
      %23 = dma.done [#allocation3], 256
    $region13: #{tpu_custom_call.1} parent=1 // pred_fallthru
      _
    %v24 = vld [vmem:[#allocation2] sm:$0xff]
    %v25 = vld [vmem:[#allocation2 + $0x8] sm:$0xff]
    %v26 = vld [vmem:[%s0] sm:$0xff]
    %s27 = smul.u32 0, 256
    %v28 = vstv %s27
    %v29 = vsub.s32 %v26, %v28
    %v30 = vlaneseq
    %v31 = vand.u32 %v30, 127
    %v32 = vadd.s32 %v31, 128
    %33 = vset.pattern.permute.xlu0 0
    %34 = vperm.xlu0 %33, %v29
    %v35 = vpop.permute.xlu0 %34
    %vm36 = vcmp.eq.s32.totalorder %v31, %v35
    %vm37 = vcmp.eq.s32.totalorder %v32, %v35
    %vm38 = vcmp.ne.s32.totalorder %v26, 4294967295
    %v39 = vsel %vm38, 1, 0
    %40 = vset.pattern.permute.xlu0 0
    %41 = vperm.xlu0 %40, %v39
    %v42 = vpop.permute.xlu0 %41
    %vm43 = vcmp.eq.s32.totalorder %v42, 1
    %vm44 = vmand %vm36, %vm43
    %vm45 = vmand %vm37, %vm43
    %v46 = vmul.f32 %v24, %v24
    %v47 = vmul.f32 %v25, %v25
    %v48 = vsub.f32 1.0, %v46
    %v49 = vsub.f32 1.0, %v47
    %v50 = vmax.f32 %v48, 0.0
    %v51 = vmax.f32 %v49, 0.0
    %v52 = vrsqrt.pop %v50
    %v53 = vmul.f32 %v50, %v52
    %vm54 = vcmp.eq.f32.partialorder %v50, inf
    %v55 = vsel %vm54, %v50, %v53
    %vm56 = vcmp.eq.f32.partialorder %v50, 0.0
    %v57 = vand.u32 %v50, 2147483648
    %v58 = vsel %vm56, %v57, %v55
    %v59 = vrsqrt.pop %v51
    %v60 = vmul.f32 %v51, %v59
    %vm61 = vcmp.eq.f32.partialorder %v51, inf
    %v62 = vsel %vm61, %v51, %v60
    %vm63 = vcmp.eq.f32.partialorder %v51, 0.0
    %v64 = vand.u32 %v51, 2147483648
    %v65 = vsel %vm63, %v64, %v62
    %v66 = vmul.f32 %v24, 0.87758255
    %v67 = vmul.f32 %v25, 0.87758255
    %v68 = vmul.f32 %v58, 0.47942555
    %v69 = vmul.f32 %v65, 0.47942555
    %v70 = vsub.f32 %v66, %v68
    %v71 = vsub.f32 %v67, %v69
    %vm72 = vcmp.gt.f32.partialorder %v24, -0.87758255
    %vm73 = vcmp.gt.f32.partialorder %v25, -0.87758255
    %v74 = vsub.f32 %v24, 0.23971277
    %v75 = vsub.f32 %v25, 0.23971277
    %v76 = vsel %vm72, %v70, %v74
    %v77 = vsel %vm73, %v71, %v75
    %v78 = vsel %vm44, %v76, %v24
    %v79 = vsel %vm45, %v77, %v25
    %v80 = vmul.f32 %v78, 64.0
    %v81 = vmul.f32 %v79, 64.0
    %82 = vst [vmem:[#allocation5] sm:$0xff] %v80
    %83 = vst [vmem:[#allocation5 + $0x8] sm:$0xff] %v81
    // Predicated region
    $region14: #{tpu_custom_call.1} parent=1 // pred_check
      _
    $region15: #{tpu_custom_call.1} parent=1 // pred_check_branch
      %85 = sbr.rel (0) target = $region17
    $region16: #{tpu_custom_call.1} parent=1 // pred_region
      %s87 = ssub.s32 256, 256
      %88 = vsyncadd [#allocation4], %s87
      %s90 = sshll.u32 [#allocation5], 4
      %s91 = int_to_ptr.vmem [resolvable:$true] %s90
      %93 = dma.vmem_to_hbm [thread:$0]  %s91, 256, %s2, [#allocation4]
    $region17: #{tpu_custom_call.1} parent=1 // pred_fallthru
      _
    // Predicated region
    $region18: #{tpu_custom_call.1} parent=1 // pred_check
      _
    $region19: #{tpu_custom_call.1} parent=1 // pred_check_branch
      %95 = sbr.rel (0) target = $region21
    $region20: #{tpu_custom_call.1} parent=1 // pred_region
      %96 = dma.done [#allocation4], 256
    $region21: #{tpu_custom_call.1} parent=1 // pred_fallthru
      _
    %97 = vsyncpa [#allocation3], 1
    %98 = vsyncpa [#allocation4], 1

</llo_original>
